<compile_context>
chip_gen: v6e
topology: v6e:2x2x1
jax: 0.10.0
libtpu: 0.0.40
codegen_flags: <defaults>
</compile_context>

<pallas_src>
import functools
import math

import jax
import jax.numpy as jnp
from jax import lax
from jax.experimental import pallas as pl
from jax.experimental.pallas import tpu as pltpu


def _global_pointer_kernel(h_ref, am_ref, wqk_ref, bqk_ref, cos_ref, sin_ref,
                           o_ref, q_scr, k_scr,
                           *, use_rope, use_tril, inner_dim, tile_m, tile_n, big):
    D = inner_dim
    mt = pl.program_id(2)
    nt = pl.program_id(3)

    # ---- projection + RoPE: once per (batch, entity-type), result kept in VMEM scratch.
    @pl.when(jnp.logical_and(mt == 0, nt == 0))
    def _():
        h = h_ref[0]                                                   # (S, H)
        # Fused, lane-dense q|k projection (1/sqrt(D) already folded into the q half).
        qk = jnp.dot(h, wqk_ref[0], preferred_element_type=jnp.float32) + bqk_ref[0]
        qw = qk[:, :D]                                                 # (S, D)
        kw = qk[:, D:]                                                 # (S, D)
        if use_rope:
            cos = cos_ref[...]      # (S, D) half-split layout
            sin = sin_ref[...]      # (S, D) half-split layout, sign pre-folded
            # rotate_half in half-split layout == lane roll by D/2 (XLU, no matmul).
            qw = qw * cos + pltpu.roll(qw, shift=D // 2, axis=1) * sin
            kw = kw * cos + pltpu.roll(kw, shift=D // 2, axis=1) * sin
        q_scr[...] = qw
        k_scr[...] = kw

    # ---- one (tile_m, tile_n) logits tile.
    rm = pl.multiple_of(mt * tile_m, tile_m)
    rn = pl.multiple_of(nt * tile_n, tile_n)
    q = q_scr[pl.ds(rm, tile_m), :]                                    # (tile_m, D)
    k = k_scr[pl.ds(rn, tile_n), :]                                    # (tile_n, D)
    logits = lax.dot_general(q, k, (((1,), (1,)), ((), ())),
                             preferred_element_type=jnp.float32)       # (tile_m, tile_n)

    # ---- fused masking epilogue (scale already folded into the weights).
    pad = am_ref[0]                                                    # (1, tile_n), key-axis mask
    out = logits * pad + (pad - 1.0) * big
    if use_tril:
        row = rm + lax.broadcasted_iota(jnp.int32, (tile_m, tile_n), 0)
        col = rn + lax.broadcasted_iota(jnp.int32, (tile_m, tile_n), 1)
        out = jnp.where(row > col, out - big, out)
    o_ref[0, 0] = out.astype(o_ref.dtype)


def _half_split(x):
    """Interleaved (d0,d1,d2,...) -> half-split (d0,d2,... | d1,d3,...) column permutation."""
    return jnp.concatenate([x[..., 0::2], x[..., 1::2]], axis=-1)


def _make_rope_tables_half_split(seq_len, inner_dim):
    """cos / signed-sin tables in half-split layout (sign of rotate_half folded into sin)."""
    pos = jnp.arange(seq_len, dtype=jnp.float32)[:, None]              # (S, 1)
    idx = jnp.arange(inner_dim // 2, dtype=jnp.float32)
    theta = jnp.power(10000.0, -2.0 * idx / inner_dim)                 # (D/2,)
    ang = pos * theta                                                  # (S, D/2)
    cos_h, sin_h = jnp.cos(ang), jnp.sin(ang)
    cos_hs = jnp.concatenate([cos_h, cos_h], axis=-1)                  # (S, D)
    sin_hs_signed = jnp.concatenate([-sin_h, sin_h], axis=-1)          # (S, D)
    return cos_hs, sin_hs_signed


def _pick_tile(s, target=512):
    if s <= target:
        return s
    for t in (512, 384, 256, 128):
        if s % t == 0:
            return t
    return s  # fall back to whole-S block
    # TODO(synk): pad ragged sequence lengths to a multiple of 128 in the caller
    # so the output block stays lane-dense on v5e.


def global_pointer_logits(last_hidden_state, attention_mask, wq, wk, bq, bk,
                          *, rope=True, tril_mask=True, out_dtype=jnp.float32):
    B, S, H = last_hidden_state.shape
    E, _, D = wq.shape
    if rope:
        assert D % 2 == 0, "RoPE requires an even inner_dim"
    scale = 1.0 / math.sqrt(D)

    # Host-side prep: half-split permutation, 1/sqrt(D) fold into q, q|k fusion.
    wq_p = _half_split(wq) * scale                                     # (E, H, D)
    bq_p = _half_split(bq) * scale                                     # (E, D)
    wk_p = _half_split(wk)
    bk_p = _half_split(bk)
    wqk = jnp.concatenate([wq_p, wk_p], axis=-1)                       # (E, H, 2D)
    bqk = jnp.concatenate([bq_p, bk_p], axis=-1).reshape(E, 1, 2 * D)  # (E, 1, 2D)

    cos_hs, sin_hs = _make_rope_tables_half_split(S, D)
    am = attention_mask.astype(jnp.float32).reshape(B, 1, S)

    tm = _pick_tile(S)
    tn = _pick_tile(S)
    assert S % tm == 0 and S % tn == 0
    grid = (B, E, S // tm, S // tn)

    kernel = functools.partial(
        _global_pointer_kernel, use_rope=rope, use_tril=tril_mask,
        inner_dim=D, tile_m=tm, tile_n=tn, big=1e12 * scale)

    # Raise the scoped VMEM limit only when the per-step working set needs it.
    out_itemsize = jnp.dtype(out_dtype).itemsize
    in_bytes = 4 * (S * H + S + H * 2 * D + 2 * D + 2 * S * D)
    vmem_est = 2 * (in_bytes + out_itemsize * tm * tn) + 4 * 2 * S * D
    cp = dict(dimension_semantics=("parallel", "arbitrary", "arbitrary", "arbitrary"))
    if vmem_est > 30 * 1024 * 1024:
        # 96 MiB cap is fine on v5e/v6e; on v7x the <=512 output tiling keeps the
        # estimate below the default limit anyway.
        cp["vmem_limit_bytes"] = min(int(vmem_est * 1.4), 96 * 1024 * 1024)

    return pl.pallas_call(
        kernel,
        out_shape=jax.ShapeDtypeStruct((B, E, S, S), out_dtype),
        grid_spec=pltpu.PrefetchScalarGridSpec(
            num_scalar_prefetch=0,
            grid=grid,
            in_specs=[
                pl.BlockSpec((1, S, H), lambda b, e, m, n: (b, 0, 0)),      # hidden (reused across e, m, n)
                pl.BlockSpec((1, 1, tn), lambda b, e, m, n: (b, 0, n)),     # padding mask (key tile)
                pl.BlockSpec((1, H, 2 * D), lambda b, e, m, n: (e, 0, 0)),  # fused Wq|Wk
                pl.BlockSpec((1, 1, 2 * D), lambda b, e, m, n: (e, 0, 0)),  # fused bq|bk
                pl.BlockSpec((S, D), lambda b, e, m, n: (0, 0)),            # cos (half-split)
                pl.BlockSpec((S, D), lambda b, e, m, n: (0, 0)),            # sin (half-split, signed)
            ],
            out_specs=pl.BlockSpec((1, 1, tm, tn), lambda b, e, m, n: (b, e, m, n)),
            scratch_shapes=[pltpu.VMEM((S, D), jnp.float32),                # qw (per (b, e))
                            pltpu.VMEM((S, D), jnp.float32)],               # kw (per (b, e))
        ),
        compiler_params=pltpu.CompilerParams(**cp),
        # TODO(synk): for very small S with large B*E, block several entity types
        # per step to amortize per-grid-step overhead; output can also be emitted
        # in bfloat16 (out_dtype=jnp.bfloat16) to halve the HBM writeback.
    )(last_hidden_state, am, wqk, bqk, cos_hs, sin_hs)


# ------------------------- pure-JAX reference (PyTorch semantics) -------------------------

def make_rope_tables(seq_len, inner_dim):
    """cos/sin tables matching sinusoidal_position_embedding + repeat_interleave(2)."""
    pos = jnp.arange(seq_len, dtype=jnp.float32)[:, None]
    idx = jnp.arange(inner_dim // 2, dtype=jnp.float32)
    theta = jnp.power(10000.0, -2.0 * idx / inner_dim)
    ang = pos * theta
    cos_pos = jnp.repeat(jnp.cos(ang), 2, axis=-1)
    sin_pos = jnp.repeat(jnp.sin(ang), 2, axis=-1)
    return cos_pos, sin_pos


def reference_global_pointer(h, attention_mask, wq, wk, bq, bk, cos_pos, sin_pos):
    """Pure-JAX reference mirroring the PyTorch forward (for correctness check)."""
    B, S, H = h.shape
    E, _, D = wq.shape
    qw = jnp.einsum('bsh,ehd->bsed', h, wq) + bq[None, None]
    kw = jnp.einsum('bsh,ehd->bsed', h, wk) + bk[None, None]

    def rope(x):
        x2 = jnp.stack([-x[..., 1::2], x[..., ::2]], axis=-1).reshape(x.shape)
        return x * cos_pos[None, :, None, :] + x2 * sin_pos[None, :, None, :]

    qw, kw = rope(qw), rope(kw)
    logits = jnp.einsum('bmed,bned->bemn', qw, kw)
    pad = attention_mask.astype(jnp.float32)[:, None, None, :]        # mask over key axis
    pad = jnp.broadcast_to(pad, logits.shape)
    logits = logits * pad - (1.0 - pad) * 1e12
    tril = jnp.tril(jnp.ones((S, S), jnp.float32), -1)[None, None]
    logits = logits - tril * 1e12
    return logits / (D ** 0.5)


if __name__ == "__main__":
    # Small deterministic configuration.
    B, S, H = 2, 8, 32          # batch, seq_len, encoder hidden size
    E, D = 4, 8                 # ent_type_size, inner_dim
    VOCAB = 100

    key = jax.random.PRNGKey(0)
    k_ids, k_tt, k_we, k_te, k_pe, k_w, k_b = jax.random.split(key, 7)

    input_ids = jax.random.randint(k_ids, (B, S), 0, VOCAB, dtype=jnp.int32)
    token_type_ids = jax.random.randint(k_tt, (B, S), 0, 2, dtype=jnp.int32)
    attention_mask = jnp.concatenate(
        [jnp.ones((B, S - 2), jnp.float32), jnp.zeros((B, 2), jnp.float32)], axis=-1)

    # TODO(synk): the real BERT encoder is not translated; replaced here by a
    # synthetic deterministic embedding encoder producing last_hidden_state.
    word_emb = jax.random.normal(k_we, (VOCAB, H), jnp.float32) * 0.1
    type_emb = jax.random.normal(k_te, (2, H), jnp.float32) * 0.1
    pos_emb_tbl = jax.random.normal(k_pe, (S, H), jnp.float32) * 0.1
    last_hidden_state = jnp.tanh(
        word_emb[input_ids] + type_emb[token_type_ids] + pos_emb_tbl[None, :, :])

    # nn.Linear(H, E * D * 2): build as (H, E*2D) and split into per-type q/k projections.
    w_full = jax.random.normal(k_w, (H, E * 2 * D), jnp.float32) * 0.05
    b_full = jax.random.normal(k_b, (E * 2 * D,), jnp.float32) * 0.05
    w3 = w_full.reshape(H, E, 2 * D)
    wq = jnp.transpose(w3[:, :, :D], (1, 0, 2))    # (E, H, D)
    wk = jnp.transpose(w3[:, :, D:], (1, 0, 2))    # (E, H, D)
    b2 = b_full.reshape(E, 2 * D)
    bq, bk = b2[:, :D], b2[:, D:]                  # (E, D)

    logits = global_pointer_logits(last_hidden_state, attention_mask,
                                   wq, wk, bq, bk, rope=True, tril_mask=True)
    logits = jax.block_until_ready(logits)

    cos_pos, sin_pos = make_rope_tables(S, D)
    ref = reference_global_pointer(last_hidden_state, attention_mask,
                                   wq, wk, bq, bk, cos_pos, sin_pos)
    assert logits.shape == (B, E, S, S)
    assert jnp.allclose(logits, ref, atol=1e-3, rtol=1e-3), \
        float(jnp.max(jnp.abs(logits - ref)))

    print("KERNEL_OK")
</pallas_src>

<mosaic_0001>
module attributes {stable_mosaic.version = 11 : i64} {
  func.func @_global_pointer_kernel(%arg0: i32, %arg1: i32, %arg2: i32, %arg3: i32, %arg4: memref<1x8x32xf32, #tpu.memory_space<vmem>>, %arg5: memref<1x1x8xf32, #tpu.memory_space<vmem>>, %arg6: memref<1x32x16xf32, #tpu.memory_space<vmem>>, %arg7: memref<1x1x16xf32, #tpu.memory_space<vmem>>, %arg8: memref<8x8xf32, #tpu.memory_space<vmem>>, %arg9: memref<8x8xf32, #tpu.memory_space<vmem>>, %arg10: memref<1x1x8x8xf32, #tpu.memory_space<vmem>>, %arg11: memref<8x8xf32, #tpu.memory_space<vmem>>, %arg12: memref<8x8xf32, #tpu.memory_space<vmem>>) attributes {dimension_semantics = [#tpu.dimension_semantics<parallel>, #tpu.dimension_semantics<arbitrary>, #tpu.dimension_semantics<arbitrary>, #tpu.dimension_semantics<arbitrary>], iteration_bounds = array<i64: 2, 4, 1, 1>, scalar_prefetch = 0 : i64, scratch_operands = 2 : i64, tpu.core_type = #tpu.core_type<tc>, window_params = [{transform_indices = @transform_0, window_bounds = array<i64: 1, 8, 32>}, {transform_indices = @transform_1, window_bounds = array<i64: 1, 1, 8>}, {transform_indices = @transform_2, window_bounds = array<i64: 1, 32, 16>}, {transform_indices = @transform_3, window_bounds = array<i64: 1, 1, 16>}, {pipeline_mode = #tpu.pipeline_mode<synchronous>, transform_indices = @transform_4, window_bounds = array<i64: 8, 8>}, {pipeline_mode = #tpu.pipeline_mode<synchronous>, transform_indices = @transform_5, window_bounds = array<i64: 8, 8>}, {transform_indices = @transform_6, window_bounds = array<i64: 1, 1, 8, 8>}]} {
    %c0_i32 = arith.constant 0 : i32
    %0 = arith.cmpi eq, %arg2, %c0_i32 : i32
    %c0_i32_0 = arith.constant 0 : i32
    %1 = arith.cmpi eq, %arg3, %c0_i32_0 : i32
    %2 = arith.andi %0, %1 : i1
    %3 = arith.extui %2 : i1 to i32
    %c0_i32_1 = arith.constant 0 : i32
    %4 = arith.cmpi ne, %3, %c0_i32_1 : i32
    scf.if %4 {
      %c0_14 = arith.constant 0 : index
      %c0_15 = arith.constant 0 : index
      %c0_16 = arith.constant 0 : index
      %37 = vector.load %arg4[%c0_14, %c0_15, %c0_16] : memref<1x8x32xf32, #tpu.memory_space<vmem>>, vector<1x8x32xf32>
      %38 = vector.shape_cast %37 : vector<1x8x32xf32> to vector<8x32xf32>
      %c0_17 = arith.constant 0 : index
      %c0_18 = arith.constant 0 : index
      %c0_19 = arith.constant 0 : index
      %39 = vector.load %arg6[%c0_17, %c0_18, %c0_19] : memref<1x32x16xf32, #tpu.memory_space<vmem>>, vector<1x32x16xf32>
      %40 = vector.shape_cast %39 : vector<1x32x16xf32> to vector<32x16xf32>
      %cst_20 = arith.constant dense<0.000000e+00> : vector<8x16xf32>
      %41 = tpu.matmul %38, %40, %cst_20 {dimension_numbers = #tpu.dot_dimension_numbers<[1], [0], [0], [1], [0, 0, 1, 1], [], []>} : vector<8x32xf32>, vector<32x16xf32>, vector<8x16xf32> -> vector<8x16xf32>
      %c0_21 = arith.constant 0 : index
      %c0_22 = arith.constant 0 : index
      %c0_23 = arith.constant 0 : index
      %42 = vector.load %arg7[%c0_21, %c0_22, %c0_23] : memref<1x1x16xf32, #tpu.memory_space<vmem>>, vector<1x1x16xf32>
      %43 = vector.shape_cast %42 : vector<1x1x16xf32> to vector<1x16xf32>
      %44 = vector.broadcast %43 : vector<1x16xf32> to vector<8x16xf32>
      %45 = arith.addf %41, %44 : vector<8x16xf32>
      %46 = vector.extract_strided_slice %45 {offsets = [0, 0], sizes = [8, 8], strides = [1, 1]} : vector<8x16xf32> to vector<8x8xf32>
      %47 = vector.extract_strided_slice %45 {offsets = [0, 8], sizes = [8, 8], strides = [1, 1]} : vector<8x16xf32> to vector<8x8xf32>
      %c0_24 = arith.constant 0 : index
      %c0_25 = arith.constant 0 : index
      %48 = vector.load %arg8[%c0_24, %c0_25] : memref<8x8xf32, #tpu.memory_space<vmem>>, vector<8x8xf32>
      %c0_26 = arith.constant 0 : index
      %c0_27 = arith.constant 0 : index
      %49 = vector.load %arg9[%c0_26, %c0_27] : memref<8x8xf32, #tpu.memory_space<vmem>>, vector<8x8xf32>
      %50 = arith.mulf %46, %48 : vector<8x8xf32>
      %c4_i32 = arith.constant 4 : i32
      %51 = tpu.dynamic_rotate %46 by %c4_i32 dim 1 : vector<8x8xf32>, i32 -> vector<8x8xf32>
      %52 = arith.mulf %51, %49 : vector<8x8xf32>
      %53 = arith.addf %50, %52 : vector<8x8xf32>
      %54 = arith.mulf %47, %48 : vector<8x8xf32>
      %c4_i32_28 = arith.constant 4 : i32
      %55 = tpu.dynamic_rotate %47 by %c4_i32_28 dim 1 : vector<8x8xf32>, i32 -> vector<8x8xf32>
      %56 = arith.mulf %55, %49 : vector<8x8xf32>
      %57 = arith.addf %54, %56 : vector<8x8xf32>
      %c0_29 = arith.constant 0 : index
      %c0_30 = arith.constant 0 : index
      %58 = vector.load %arg11[%c0_29, %c0_30] : memref<8x8xf32, #tpu.memory_space<vmem>>, vector<8x8xf32>
      tpu.vector_store %arg11[%c0_29, %c0_30], %53 {strides = array<i32>} : memref<8x8xf32, #tpu.memory_space<vmem>>, vector<8x8xf32>,
      %c0_31 = arith.constant 0 : index
      %c0_32 = arith.constant 0 : index
      %59 = vector.load %arg12[%c0_31, %c0_32] : memref<8x8xf32, #tpu.memory_space<vmem>>, vector<8x8xf32>
      tpu.vector_store %arg12[%c0_31, %c0_32], %57 {strides = array<i32>} : memref<8x8xf32, #tpu.memory_space<vmem>>, vector<8x8xf32>,
    } else {
    }
    %c8_i32 = arith.constant 8 : i32
    %5 = arith.muli %arg2, %c8_i32 : i32
    %6 = tpu.assume_multiple %5, 8 : i32
    %c8_i32_2 = arith.constant 8 : i32
    %7 = arith.muli %arg3, %c8_i32_2 : i32
    %8 = tpu.assume_multiple %7, 8 : i32
    %9 = arith.index_cast %6 : i32 to index
    %c0 = arith.constant 0 : index
    %10 = vector.load %arg11[%9, %c0] : memref<8x8xf32, #tpu.memory_space<vmem>>, vector<8x8xf32>
    %11 = arith.index_cast %8 : i32 to index
    %c0_3 = arith.constant 0 : index
    %12 = vector.load %arg12[%11, %c0_3] : memref<8x8xf32, #tpu.memory_space<vmem>>, vector<8x8xf32>
    %cst = arith.constant dense<0.000000e+00> : vector<8x8xf32>
    %13 = tpu.matmul %10, %12, %cst {dimension_numbers = #tpu.dot_dimension_numbers<[1], [1], [0], [0], [0, 0, 1, 0], [], []>} : vector<8x8xf32>, vector<8x8xf32>, vector<8x8xf32> -> vector<8x8xf32>
    %c0_4 = arith.constant 0 : index
    %c0_5 = arith.constant 0 : index
    %c0_6 = arith.constant 0 : index
    %14 = vector.load %arg5[%c0_4, %c0_5, %c0_6] : memref<1x1x8xf32, #tpu.memory_space<vmem>>, vector<1x1x8xf32>
    %15 = vector.shape_cast %14 : vector<1x1x8xf32> to vector<1x8xf32>
    %16 = vector.broadcast %15 : vector<1x8xf32> to vector<8x8xf32>
    %17 = arith.mulf %13, %16 : vector<8x8xf32>
    %cst_7 = arith.constant 1.000000e+00 : f32
    %18 = vector.broadcast %cst_7 : f32 to vector<1x8xf32>
    %19 = arith.subf %15, %18 : vector<1x8xf32>
    %cst_8 = arith.constant 3.53553383E+11 : f32
    %20 = vector.broadcast %cst_8 : f32 to vector<1x8xf32>
    %21 = arith.mulf %19, %20 : vector<1x8xf32>
    %22 = vector.broadcast %21 : vector<1x8xf32> to vector<8x8xf32>
    %23 = arith.addf %17, %22 : vector<8x8xf32>
    %24 = tpu.iota {dimensions = array<i32: 0>} : vector<8x8xi32>
    %25 = vector.broadcast %6 : i32 to vector<8x8xi32>
    %26 = arith.addi %25, %24 : vector<8x8xi32>
    %27 = tpu.iota {dimensions = array<i32: 1>} : vector<8x8xi32>
    %28 = vector.broadcast %8 : i32 to vector<8x8xi32>
    %29 = arith.addi %28, %27 : vector<8x8xi32>
    %30 = arith.cmpi sgt, %26, %29 : vector<8x8xi32>
    %cst_9 = arith.constant 3.53553383E+11 : f32
    %31 = vector.broadcast %cst_9 : f32 to vector<8x8xf32>
    %32 = arith.subf %23, %31 : vector<8x8xf32>
    %33 = arith.select %30, %32, %23 : vector<8x8xi1>, vector<8x8xf32>
    %c0_10 = arith.constant 0 : index
    %c0_11 = arith.constant 0 : index
    %c0_12 = arith.constant 0 : index
    %c0_13 = arith.constant 0 : index
    %34 = vector.load %arg10[%c0_10, %c0_11, %c0_12, %c0_13] : memref<1x1x8x8xf32, #tpu.memory_space<vmem>>, vector<1x1x8x8xf32>
    %35 = vector.shape_cast %34 : vector<1x1x8x8xf32> to vector<8x8xf32>
    %36 = vector.shape_cast %33 : vector<8x8xf32> to vector<1x1x8x8xf32>
    tpu.vector_store %arg10[%c0_10, %c0_11, %c0_12, %c0_13], %36 {strides = array<i32>} : memref<1x1x8x8xf32, #tpu.memory_space<vmem>>, vector<1x1x8x8xf32>,
    return
  }
  func.func @transform_0(%arg0: i32, %arg1: i32, %arg2: i32, %arg3: i32) -> (i32, i32, i32) {
    %c0_i32 = arith.constant 0 : i32
    %c0_i32_0 = arith.constant 0 : i32
    %c0_i32_1 = arith.constant 0 : i32
    return %arg0, %c0_i32, %c0_i32_0 : i32, i32, i32
  }
  func.func @transform_1(%arg0: i32, %arg1: i32, %arg2: i32, %arg3: i32) -> (i32, i32, i32) {
    %c0_i32 = arith.constant 0 : i32
    %c0_i32_0 = arith.constant 0 : i32
    return %arg0, %c0_i32, %arg3 : i32, i32, i32
  }
  func.func @transform_2(%arg0: i32, %arg1: i32, %arg2: i32, %arg3: i32) -> (i32, i32, i32) {
    %c0_i32 = arith.constant 0 : i32
    %c0_i32_0 = arith.constant 0 : i32
    %c0_i32_1 = arith.constant 0 : i32
    return %arg1, %c0_i32, %c0_i32_0 : i32, i32, i32
  }
  func.func @transform_3(%arg0: i32, %arg1: i32, %arg2: i32, %arg3: i32) -> (i32, i32, i32) {
    %c0_i32 = arith.constant 0 : i32
    %c0_i32_0 = arith.constant 0 : i32
    %c0_i32_1 = arith.constant 0 : i32
    return %arg1, %c0_i32, %c0_i32_0 : i32, i32, i32
  }
  func.func @transform_4(%arg0: i32, %arg1: i32, %arg2: i32, %arg3: i32) -> (i32, i32) {
    %c0_i32 = arith.constant 0 : i32
    %c0_i32_0 = arith.constant 0 : i32
    %c0_i32_1 = arith.constant 0 : i32
    return %c0_i32, %c0_i32_0 : i32, i32
  }
  func.func @transform_5(%arg0: i32, %arg1: i32, %arg2: i32, %arg3: i32) -> (i32, i32) {
    %c0_i32 = arith.constant 0 : i32
    %c0_i32_0 = arith.constant 0 : i32
    %c0_i32_1 = arith.constant 0 : i32
    return %c0_i32, %c0_i32_0 : i32, i32
  }
  func.func @transform_6(%arg0: i32, %arg1: i32, %arg2: i32, %arg3: i32) -> (i32, i32, i32, i32) {
    %c0_i32 = arith.constant 0 : i32
    return %arg0, %arg1, %arg2, %arg3 : i32, i32, i32, i32
  }
}

</mosaic_0001>

<llo_original>
// kernel: tpu_custom_call.1
$region0: #{tpu_custom_call.1}
  #allocation0 [shape = 'u32[]', space=smem, size = 0x4, offset = 0x4, fixed_abs, tag = 'smem constant byte address 0x4 - core index']
  #allocation1 [shape = 'u32[144,128]{1,0:T(1,128)}', space=vmem, size = 0x12000, scoped, tag = 'internal scratch']
  #allocation2 [shape = 'f32[8,8]{1,0:T(8,128)}', space=vmem, size = 0x1000, scoped, tag = 'scratch operand']
  #allocation3 [shape = 'f32[8,8]{1,0:T(8,128)}', space=vmem, size = 0x1000, scoped, tag = 'scratch operand']
  %s0 = inlined_call_operand.vmem [shape: f32[2,8,32], index: 0, kind: input, shape index: {}]
  %s1 = inlined_call_operand.vmem [shape: f32[2,1,8], index: 1, kind: input, shape index: {}]
  %s2 = inlined_call_operand.vmem [shape: f32[4,32,16], index: 2, kind: input, shape index: {}]
  %s3 = inlined_call_operand.vmem [shape: f32[4,1,16], index: 3, kind: input, shape index: {}]
  %s4 = inlined_call_operand.vmem [shape: f32[8,8], index: 4, kind: input, shape index: {}]
  %s5 = inlined_call_operand.vmem [shape: f32[8,8], index: 5, kind: input, shape index: {}]
  %s6 = inlined_call_operand.hbm [shape: f32[2,4,8,8], index: 6, kind: output, shape index: {}]
  %s7 = sld [smem:[#allocation0]]
  $region61: #{tpu_custom_call.1} parent=0
    _
  %s9 = ssub.s32 1, %s7
  %s10 = scalar_select 0, %s9, %s7
  $region1: #{tpu_custom_call.1} parent=0
    #allocation4 [shape = 'u8[8192]{0}', space=vmem, size = 0x2000, scoped, tag = 'output window, operand 0']
    #allocation5 [shape = 's32[2]{0}', space=sflag, size = 0x8, scoped, tag = 'scoped memory for tpu_custom_call.1']
    %11 = vsyncpa [#allocation5], 0
    %s12 = scalar_lea.sflag [#allocation5], 1
    %13 = vsyncpa %s12, 0
    loop: start=0, step=1, limit=10
    $region2: #{tpu_custom_call.1} parent=1 // loop_pre_header
      _
    $region3: #{tpu_custom_call.1} parent=1 // loop_header
      %s15 = sphi 0, %s19
      %p16 = scmp.ge.s32.totalorder %s15, 10
      %s22 = sphi 0, %s48
      %s23 = sphi 0, %s44
      %s24 = sphi 0, %s40
      %s25 = sphi 0, %s36
      %s26 = sphi 0, %s22
      %s27 = sphi 0, %s23
      %s28 = sphi 0, %s24
      %s29 = sphi 0, %s25
      %s30 = sphi 0, %s26
      %s31 = sphi 0, %s27
      %s32 = sphi 0, %s28
      %s33 = sphi 0, %s29
      %s51 = sphi 0, %s53
      %s54 = sphi 0, %s51
      %s55 = sphi 0, %s54
      %s71 = sphi 0, %s55
      %s79 = sphi 0, %s81
      %s82 = sphi 0, %s79
      %s83 = sphi 0, %s82
      %s99 = sphi 0, %s83
      %s105 = sphi 0, %s107
      %s108 = sphi 0, %s105
      %s109 = sphi 0, %s108
      %s125 = sphi 0, %s109
      %s131 = sphi 0, %s133
      %s134 = sphi 0, %s131
      %s135 = sphi 0, %s134
      %s151 = sphi 0, %s135
      %s155 = sphi 0, %s155
      %s157 = sphi 0, %s155
      %s158 = sphi 0, %s157
      %s172 = sphi 0, %s158
      %s176 = sphi 0, %s176
      %s178 = sphi 0, %s176
      %s179 = sphi 0, %s178
      %s193 = sphi 0, %s179
      %s205 = sphi 0, %s207
      %s208 = sphi 0, %s205
      %s209 = sphi 0, %s208
      %s225 = sphi 0, %s209
    $region4: #{tpu_custom_call.1} parent=1 // loop_header_branch
      %18 = sbr.rel (%p16) target = $region8
    $region5: #{tpu_custom_call.1} parent=1 // loop_body
      %s20 = ssub.s32 %s15, 1
      %s21 = ssub.s32 %s15, 2
      %s34 = sadd.s32 1, %s25
      %p35 = scmp.ge.s32.totalorder %s34, 1
      %s36 = scalar_select %p35, 0, %s34
      %s37 = sadd.s32 1, %s24
      %s38 = scalar_select %p35, %s37, %s24
      %p39 = scmp.ge.s32.totalorder %s38, 1
      %s40 = scalar_select %p39, 0, %s38
      %s41 = sadd.s32 1, %s23
      %s42 = scalar_select %p39, %s41, %s23
      %p43 = scmp.ge.s32.totalorder %s42, 4
      %s44 = scalar_select %p43, 0, %s42
      %s45 = sadd.s32 1, %s22
      %s46 = scalar_select %p43, %s45, %s22
      %p47 = scmp.ge.s32.totalorder %s46, 2
      %s48 = scalar_select %p47, 0, %s46
      %s49 = ssub.s32 %s22, %s48
      %p50 = scmp.eq.s32.totalorder %s49, 0
      %s52 = sadd.s32 %s51, 1
      %s53 = scalar_select %p50, %s51, %s52
      %p56 = pneg %p50
      %p57 = scmp.eq.s32.totalorder %s15, 7
      %p58 = por %p56, %p57
      %p59 = scmp.ne.s32.totalorder %s51, %s54
      %p60 = scmp.eq.s32.totalorder %s15, 0
      %p61 = por %p59, %p60
      %p62 = scmp.ne.s32.totalorder %s51, %s54
      %p63 = scmp.eq.s32.totalorder %s20, 7
      %p64 = por %p62, %p63
      %p65 = scmp.ne.s32.totalorder %s54, %s55
      %p66 = scmp.eq.s32.totalorder %s20, 0
      %p67 = por %p65, %p66
      %p68 = scmp.ne.s32.totalorder %s54, %s55
      %p69 = scmp.eq.s32.totalorder %s21, 7
      %p70 = por %p68, %p69
      %p72 = scmp.ne.s32.totalorder %s55, %s71
      %p73 = scmp.eq.s32.totalorder %s21, 0
      %p74 = por %p72, %p73
      %s75 = ssub.s32 %s22, %s48
      %s76 = ssub.s32 %s25, %s36
      %s77 = sor.u32 %s75, %s76
      %p78 = scmp.eq.s32.totalorder %s77, 0
      %s80 = sadd.s32 %s79, 1
      %s81 = scalar_select %p78, %s79, %s80
      %p84 = pneg %p78
      %p85 = scmp.eq.s32.totalorder %s15, 7
      %p86 = por %p84, %p85
      %p87 = scmp.ne.s32.totalorder %s79, %s82
      %p88 = scmp.eq.s32.totalorder %s15, 0
      %p89 = por %p87, %p88
      %p90 = scmp.ne.s32.totalorder %s79, %s82
      %p91 = scmp.eq.s32.totalorder %s20, 7
      %p92 = por %p90, %p91
      %p93 = scmp.ne.s32.totalorder %s82, %s83
      %p94 = scmp.eq.s32.totalorder %s20, 0
      %p95 = por %p93, %p94
      %p96 = scmp.ne.s32.totalorder %s82, %s83
      %p97 = scmp.eq.s32.totalorder %s21, 7
      %p98 = por %p96, %p97
      %p100 = scmp.ne.s32.totalorder %s83, %s99
      %p101 = scmp.eq.s32.totalorder %s21, 0
      %p102 = por %p100, %p101
      %s103 = ssub.s32 %s23, %s44
      %p104 = scmp.eq.s32.totalorder %s103, 0
      %s106 = sadd.s32 %s105, 1
      %s107 = scalar_select %p104, %s105, %s106
      %p110 = pneg %p104
      %p111 = scmp.eq.s32.totalorder %s15, 7
      %p112 = por %p110, %p111
      %p113 = scmp.ne.s32.totalorder %s105, %s108
      %p114 = scmp.eq.s32.totalorder %s15, 0
      %p115 = por %p113, %p114
      %p116 = scmp.ne.s32.totalorder %s105, %s108
      %p117 = scmp.eq.s32.totalorder %s20, 7
      %p118 = por %p116, %p117
      %p119 = scmp.ne.s32.totalorder %s108, %s109
      %p120 = scmp.eq.s32.totalorder %s20, 0
      %p121 = por %p119, %p120
      %p122 = scmp.ne.s32.totalorder %s108, %s109
      %p123 = scmp.eq.s32.totalorder %s21, 7
      %p124 = por %p122, %p123
      %p126 = scmp.ne.s32.totalorder %s109, %s125
      %p127 = scmp.eq.s32.totalorder %s21, 0
      %p128 = por %p126, %p127
      %s129 = ssub.s32 %s23, %s44
      %p130 = scmp.eq.s32.totalorder %s129, 0
      %s132 = sadd.s32 %s131, 1
      %s133 = scalar_select %p130, %s131, %s132
      %p136 = pneg %p130
      %p137 = scmp.eq.s32.totalorder %s15, 7
      %p138 = por %p136, %p137
      %p139 = scmp.ne.s32.totalorder %s131, %s134
      %p140 = scmp.eq.s32.totalorder %s15, 0
      %p141 = por %p139, %p140
      %p142 = scmp.ne.s32.totalorder %s131, %s134
      %p143 = scmp.eq.s32.totalorder %s20, 7
      %p144 = por %p142, %p143
      %p145 = scmp.ne.s32.totalorder %s134, %s135
      %p146 = scmp.eq.s32.totalorder %s20, 0
      %p147 = por %p145, %p146
      %p148 = scmp.ne.s32.totalorder %s134, %s135
      %p149 = scmp.eq.s32.totalorder %s21, 7
      %p150 = por %p148, %p149
      %p152 = scmp.ne.s32.totalorder %s135, %s151
      %p153 = scmp.eq.s32.totalorder %s21, 0
      %p154 = por %p152, %p153
      %s156 = sadd.s32 %s155, 1
      %p159 = scmp.eq.s32.totalorder %s15, 7
      %p160 = scmp.ne.s32.totalorder %s155, %s157
      %p161 = scmp.eq.s32.totalorder %s15, 0
      %p162 = por %p160, %p161
      %p163 = scmp.ne.s32.totalorder %s155, %s157
      %p164 = scmp.eq.s32.totalorder %s20, 7
      %p165 = por %p163, %p164
      %p166 = scmp.ne.s32.totalorder %s157, %s158
      %p167 = scmp.eq.s32.totalorder %s20, 0
      %p168 = por %p166, %p167
      %p169 = scmp.ne.s32.totalorder %s157, %s158
      %p170 = scmp.eq.s32.totalorder %s21, 7
      %p171 = por %p169, %p170
      %p173 = scmp.ne.s32.totalorder %s158, %s172
      %p174 = scmp.eq.s32.totalorder %s21, 0
      %p175 = por %p173, %p174
      %s177 = sadd.s32 %s176, 1
      %p180 = scmp.eq.s32.totalorder %s15, 7
      %p181 = scmp.ne.s32.totalorder %s176, %s178
      %p182 = scmp.eq.s32.totalorder %s15, 0
      %p183 = por %p181, %p182
      %p184 = scmp.ne.s32.totalorder %s176, %s178
      %p185 = scmp.eq.s32.totalorder %s20, 7
      %p186 = por %p184, %p185
      %p187 = scmp.ne.s32.totalorder %s178, %s179
      %p188 = scmp.eq.s32.totalorder %s20, 0
      %p189 = por %p187, %p188
      %p190 = scmp.ne.s32.totalorder %s178, %s179
      %p191 = scmp.eq.s32.totalorder %s21, 7
      %p192 = por %p190, %p191
      %p194 = scmp.ne.s32.totalorder %s179, %s193
      %p195 = scmp.eq.s32.totalorder %s21, 0
      %p196 = por %p194, %p195
      %s197 = ssub.s32 %s22, %s48
      %s198 = ssub.s32 %s23, %s44
      %s199 = sor.u32 %s197, %s198
      %s200 = ssub.s32 %s24, %s40
      %s201 = sor.u32 %s199, %s200
      %s202 = ssub.s32 %s25, %s36
      %s203 = sor.u32 %s201, %s202
      %p204 = scmp.eq.s32.totalorder %s203, 0
      %s206 = sadd.s32 %s205, 1
      %s207 = scalar_select %p204, %s205, %s206
      %p210 = pneg %p204
      %p211 = scmp.eq.s32.totalorder %s15, 7
      %p212 = por %p210, %p211
      %p213 = scmp.ne.s32.totalorder %s205, %s208
      %p214 = scmp.eq.s32.totalorder %s15, 0
      %p215 = por %p213, %p214
      %p216 = scmp.ne.s32.totalorder %s205, %s208
      %p217 = scmp.eq.s32.totalorder %s20, 7
      %p218 = por %p216, %p217
      %p219 = scmp.ne.s32.totalorder %s208, %s209
      %p220 = scmp.eq.s32.totalorder %s20, 0
      %p221 = por %p219, %p220
      %p222 = scmp.ne.s32.totalorder %s208, %s209
      %p223 = scmp.eq.s32.totalorder %s21, 7
      %p224 = por %p222, %p223
      %p226 = scmp.ne.s32.totalorder %s209, %s225
      %p227 = scmp.eq.s32.totalorder %s21, 0
      %p228 = por %p226, %p227
      %p229 = scmp.le.s32.totalorder 1, %s15
      %p230 = scmp.lt.s32.totalorder %s15, 9
      %p231 = pnand %p229, %p230
      %p232 = pneg %p231
      // Predicated region
      $region9: #{tpu_custom_call.1} parent=5 // pred_check
        _
      $region10: #{tpu_custom_call.1} parent=5 // pred_check_branch
        %234 = sbr.rel (%p231) target = $region12
      $region11: #{tpu_custom_call.1} parent=5 // pred_region
        %s235 = ssub.s32 %s15, 1
        // Predicated region
        $region13: #{tpu_custom_call.1} parent=11 // pred_check
          %p236 = pneg %p168
        $region14: #{tpu_custom_call.1} parent=11 // pred_check_branch
          %238 = sbr.rel (%p236) target = $region16
        $region15: #{tpu_custom_call.1} parent=11 // pred_region
          _
        $region16: #{tpu_custom_call.1} parent=11 // pred_fallthru
          _
        // Predicated region
        $region17: #{tpu_custom_call.1} parent=11 // pred_check
          %p239 = pneg %p189
        $region18: #{tpu_custom_call.1} parent=11 // pred_check_branch
          %241 = sbr.rel (%p239) target = $region20
        $region19: #{tpu_custom_call.1} parent=11 // pred_region
          _
        $region20: #{tpu_custom_call.1} parent=11 // pred_fallthru
          _
      $region12: #{tpu_custom_call.1} parent=5 // pred_fallthru
        _
      %p242 = scmp.lt.s32.totalorder %s15, 8
      // Predicated region
      $region21: #{tpu_custom_call.1} parent=5 // pred_check
        %p243 = pneg %p242
      $region22: #{tpu_custom_call.1} parent=5 // pred_check_branch
        %245 = sbr.rel (%p243) target = $region24
      $region23: #{tpu_custom_call.1} parent=5 // pred_region
        // Predicated region
        $region25: #{tpu_custom_call.1} parent=23 // pred_check
          %p246 = pneg %p61
        $region26: #{tpu_custom_call.1} parent=23 // pred_check_branch
          %248 = sbr.rel (%p246) target = $region28
        $region27: #{tpu_custom_call.1} parent=23 // pred_region
          %p249 = scmp.lt.s32.totalorder %s22, 1
          %s250 = scalar_select %p249, %s22, 1
          %s251 = smul.addr %s250, 8
          %s252 = scalar_lea.vmem %s0, %s251
        $region28: #{tpu_custom_call.1} parent=23 // pred_fallthru
          _
        // Predicated region
        $region29: #{tpu_custom_call.1} parent=23 // pred_check
          %p253 = pneg %p89
        $region30: #{tpu_custom_call.1} parent=23 // pred_check_branch
          %255 = sbr.rel (%p253) target = $region32
        $region31: #{tpu_custom_call.1} parent=23 // pred_region
          %p256 = scmp.lt.s32.totalorder %s22, 1
          %s257 = scalar_select %p256, %s22, 1
          %p258 = scmp.lt.s32.totalorder %s25, 0
          %s259 = scalar_select %p258, %s25, 0
          %s260 = sadd.s32 %s259, %s257
          %s261 = scalar_lea.vmem %s1, %s260
        $region32: #{tpu_custom_call.1} parent=23 // pred_fallthru
          _
        // Predicated region
        $region33: #{tpu_custom_call.1} parent=23 // pred_check
          %p262 = pneg %p115
        $region34: #{tpu_custom_call.1} parent=23 // pred_check_branch
          %264 = sbr.rel (%p262) target = $region36
        $region35: #{tpu_custom_call.1} parent=23 // pred_region
          %p265 = scmp.lt.s32.totalorder %s23, 3
          %s266 = scalar_select %p265, %s23, 3
          %s267 = smul.addr %s266, 4
          %s268 = smul.addr %s267, 8
          %s269 = scalar_lea.vmem %s2, %s268
        $region36: #{tpu_custom_call.1} parent=23 // pred_fallthru
          _
        // Predicated region
        $region37: #{tpu_custom_call.1} parent=23 // pred_check
          %p270 = pneg %p141
        $region38: #{tpu_custom_call.1} parent=23 // pred_check_branch
          %272 = sbr.rel (%p270) target = $region40
        $region39: #{tpu_custom_call.1} parent=23 // pred_region
          %p273 = scmp.lt.s32.totalorder %s23, 3
          %s274 = scalar_select %p273, %s23, 3
          %s275 = scalar_lea.vmem %s3, %s274
        $region40: #{tpu_custom_call.1} parent=23 // pred_fallthru
          _
      $region24: #{tpu_custom_call.1} parent=5 // pred_fallthru
        _
      %p276 = scmp.le.s32.totalorder 1, %s15
      %p277 = scmp.lt.s32.totalorder %s15, 9
      %p278 = pnand %p276, %p277
      %p279 = pneg %p278
      // Predicated region
      $region41: #{tpu_custom_call.1} parent=5 // pred_check
        _
      $region42: #{tpu_custom_call.1} parent=5 // pred_check_branch
        %281 = sbr.rel (%p278) target = $region44
      $region43: #{tpu_custom_call.1} parent=5 // pred_region
        %s282 = ssub.s32 %s15, 1
        %p283 = scmp.lt.s32.totalorder %s26, 1
        %s284 = scalar_select %p283, %s26, 1
        %s285 = smul.addr %s284, 8
        %s286 = scalar_lea.vmem %s0, %s285
        %p287 = pneg %p67
        %p288 = pneg %p64
        %p289 = scmp.lt.s32.totalorder %s26, 1
        %s290 = scalar_select %p289, %s26, 1
        %p291 = scmp.lt.s32.totalorder %s29, 0
        %s292 = scalar_select %p291, %s29, 0
        %s293 = sadd.s32 %s292, %s290
        %s294 = scalar_lea.vmem %s1, %s293
        %p295 = pneg %p95
        %p296 = pneg %p92
        %p297 = scmp.lt.s32.totalorder %s27, 3
        %s298 = scalar_select %p297, %s27, 3
        %s299 = smul.addr %s298, 4
        %s300 = smul.addr %s299, 8
        %s301 = scalar_lea.vmem %s2, %s300
        %p302 = pneg %p121
        %p303 = pneg %p118
        %p304 = scmp.lt.s32.totalorder %s27, 3
        %s305 = scalar_select %p304, %s27, 3
        %s306 = scalar_lea.vmem %s3, %s305
        %p307 = pneg %p147
        %p308 = pneg %p144
        %p309 = pneg %p168
        %p310 = pneg %p165
        %p311 = pneg %p189
        %p312 = pneg %p186
        %p313 = pneg %p221
        %p314 = pneg %p218
        %s315 = sand.u32 %s208, 1
        %s316 = scalar_lea.sflag [#allocation5], %s315
        %s317 = sand.u32 %s208, 1
        %s318 = smul.addr %s317, 8
        %s319 = scalar_lea.vmem [#allocation4], %s318
        %p320 = scmp.lt.s32.totalorder %s26, 1
        %s321 = scalar_select %p320, %s26, 1
        %s322 = smul.addr %s321, 8
        %s323 = scalar_lea.vmem %s0, %s322
        %p324 = scmp.lt.s32.totalorder %s26, 1
        %s325 = scalar_select %p324, %s26, 1
        %p326 = scmp.lt.s32.totalorder %s29, 0
        %s327 = scalar_select %p326, %s29, 0
        %s328 = sadd.s32 %s327, %s325
        %s329 = scalar_lea.vmem %s1, %s328
        %p330 = scmp.lt.s32.totalorder %s27, 3
        %s331 = scalar_select %p330, %s27, 3
        %s332 = smul.addr %s331, 4
        %s333 = smul.addr %s332, 8
        %s334 = scalar_lea.vmem %s2, %s333
        %p335 = scmp.lt.s32.totalorder %s27, 3
        %s336 = scalar_select %p335, %s27, 3
        %s337 = scalar_lea.vmem %s3, %s336
        %p338 = scmp.eq.s32.totalorder %s28, 0
        %p339 = scmp.eq.s32.totalorder %s29, 0
        %p340 = pnand %p338, %p339
        %p341 = pneg %p340
        // Predicated region
        $region45: #{tpu_custom_call.1} parent=43 // pred_check
          _
        $region46: #{tpu_custom_call.1} parent=43 // pred_check_branch
          %343 = sbr.rel (%p340) target = $region48
        $region47: #{tpu_custom_call.1} parent=43 // pred_region
          %v344 = vld [vmem:[%s323] sm:$0xff]
          %v345 = vld [vmem:[%s334] sm:$0xff]
          %v346 = vld [vmem:[%s334 + $0x8] sm:$0xff]
          %v347 = vld [vmem:[%s334 + $0x10] sm:$0xff]
          %v348 = vld [vmem:[%s334 + $0x18] sm:$0xff]
          %v349 = vld [vmem:[%s337] sm:$0x1]
          %v351 = vlaneseq
          %v352 = vshrl.u32 %v351, 7
          %v353 = vsub.s32 0, %v352
          %v354 = vrot.slane %v349, %v353
          %vm356 = vcmask 261120
          %v358 = vsel %vm356, %v344, 0
          %360 = vmatprep.subr.mxu0 0.0
          %361 = vmatpush1.msra.mxu0 0.0
          %362 = vmatprep.subr.mxu0 0.0
          %363 = vmatpush1.msra.mxu0 0.0
          %364 = vmatprep.subr.mxu0 0.0
          %365 = vmatpush1.msra.mxu0 0.0
          %366 = vmatprep.subr.mxu0 0.0
          %367 = vmatpush1.msra.mxu0 0.0
          %368 = vmatprep.subr.mxu0 0.0
          %369 = vmatpush1.msra.mxu0 0.0
          %370 = vmatprep.subr.mxu0 0.0
          %371 = vmatpush1.msra.mxu0 0.0
          %372 = vmatprep.subr.mxu0 0.0
          %373 = vmatpush1.msra.mxu0 0.0
          %374 = vmatprep.subr.mxu0 0.0
          %375 = vmatpush1.msra.mxu0 0.0
          %376 = vmatprep.subr.mxu0 0.0
          %377 = vmatpush1.msra.mxu0 0.0
          %378 = vmatprep.subr.mxu0 0.0
          %379 = vmatpush1.msra.mxu0 0.0
          %380 = vmatprep.subr.mxu0 0.0
          %381 = vmatpush1.msra.mxu0 0.0
          %382 = vmatprep.subr.mxu0 0.0
          %383 = vmatpush1.msra.mxu0 0.0
          %384 = vmatprep.subr.mxu0 0.0
          %385 = vmatpush1.msra.mxu0 %v348
          %386 = vmatprep.subr.mxu0 0.0
          %387 = vmatpush1.msra.mxu0 %v347
          %388 = vmatprep.subr.mxu0 0.0
          %389 = vmatpush1.msra.mxu0 %v346
          %390 = vmatprep.subr.mxu0 0.0
          %391 = vmatpush1.msra.mxu0 %v345
          %392 = vmatprep.subr.mxu0 0.0
          %393 = vmatpush2.msra.mxu0 0.0
          %394 = vmatprep.subr.mxu0 0.0
          %395 = vmatpush2.msra.mxu0 0.0
          %396 = vmatprep.subr.mxu0 0.0
          %397 = vmatpush2.msra.mxu0 0.0
          %398 = vmatprep.subr.mxu0 0.0
          %399 = vmatpush2.msra.mxu0 0.0
          %400 = vmatprep.subr.mxu0 0.0
          %401 = vmatpush2.msra.mxu0 0.0
          %402 = vmatprep.subr.mxu0 0.0
          %403 = vmatpush2.msra.mxu0 0.0
          %404 = vmatprep.subr.mxu0 0.0
          %405 = vmatpush2.msra.mxu0 0.0
          %406 = vmatprep.subr.mxu0 0.0
          %407 = vmatpush2.msra.mxu0 0.0
          %408 = vmatprep.subr.mxu0 0.0
          %409 = vmatpush2.msra.mxu0 0.0
          %410 = vmatprep.subr.mxu0 0.0
          %411 = vmatpush2.msra.mxu0 0.0
          %412 = vmatprep.subr.mxu0 0.0
          %413 = vmatpush2.msra.mxu0 0.0
          %414 = vmatprep.subr.mxu0 0.0
          %415 = vmatpush2.msra.mxu0 0.0
          %416 = vmatprep.subr.mxu0 0.0
          %417 = vmatpush2.msra.mxu0 0.0
          %418 = vmatprep.subr.mxu0 0.0
          %419 = vmatpush2.msra.mxu0 0.0
          %420 = vmatprep.subr.mxu0 0.0
          %421 = vmatpush2.msra.mxu0 0.0
          %422 = vmatprep.subr.mxu0 0.0
          %423 = vmatpush2.msra.mxu0 0.0
          %424 = vmatprep.mubr.f32.mxu0 0.0
          %425 = vmatmul.mubr.f32.gmra.mxu0 %v358
          %v426 = vpop.f32.mrf.mxu0
          %v427 = vadd.f32 %v354, %v426
          %v428 = vpop.f32.mrf.mxu0
          %429 = vdwg.mxu0
          %v430 = vld [vmem:[%s4] sm:$0xff]
          %v431 = vld [vmem:[%s5] sm:$0xff]
          %v432 = vmul.f32 %v427, %v430
          %vm433 = vcmask 1047616
          %434 = vrot.lane.b32.xlu0 %v427, 8
          %v435 = vpop.permute.xlu0 %434
          %v436 = vsel %vm433, %v435, %v427
          %437 = vrot.lane.b32.xlu0 %v436, 8
          %v438 = vpop.permute.xlu0 %437
          %v439 = vsel %vm433, %v438, %v427
          %441 = vrot.lane.b32.xlu0 %v431, 4
          %v442 = vpop.permute.xlu0 %441
          %v444 = vmul.f32 %v439, %v442
          %446 = vrot.lane.b32.xlu0 %v444, 124
          %v447 = vpop.permute.xlu0 %446
          %v449 = vadd.f32 %v432, %v447
          %451 = vrot.lane.b32.xlu0 %v430, 8
          %v452 = vpop.permute.xlu0 %451
          %v454 = vmul.f32 %v427, %v452
          %456 = vrot.lane.b32.xlu0 %v427, 120
          %v457 = vpop.permute.xlu0 %456
          %459 = vrot.lane.b32.xlu0 %v457, 8
          %v460 = vpop.permute.xlu0 %459
          %v461 = vsel %vm433, %v460, %v457
          %462 = vrot.lane.b32.xlu0 %v461, 8
          %v463 = vpop.permute.xlu0 %462
          %v464 = vsel %vm433, %v463, %v457
          %v465 = vmul.f32 %v464, %v442
          %467 = vrot.lane.b32.xlu0 %v465, 4
          %v468 = vpop.permute.xlu0 %467
          %v470 = vadd.f32 %v454, %v468
          %vm471 = vcmask 64512
          %472 = vst.msk [vmem:[#allocation2] sm:$0xff] %vm471, %v449
          %474 = vrot.lane.b32.xlu0 %v470, 120
          %v475 = vpop.permute.xlu0 %474
          %477 = vst.msk [vmem:[#allocation3] sm:$0xff] %vm471, %v475
        $region48: #{tpu_custom_call.1} parent=43 // pred_fallthru
          _
        %s478 = smul.u32 %s28, 8
        %s479 = smul.u32 %s29, 8
        %s480 = scalar_lea.vmem [#allocation2], %s478
        %v481 = vld [vmem:[%s480] sm:$0xff]
        %s482 = scalar_lea.vmem [#allocation3], %s479
        %v483 = vld [vmem:[%s482] sm:$0xff]
        %vm484 = vcmask 64512
        %v486 = vsel %vm484, %v481, 0
        %v489 = vsel %vm484, %v483, 0
        %491 = vmatprep.subr.mxu0 0.0
        %492 = vmatpush1.xpose.msra.mxu0 0.0
        %493 = vmatprep.subr.mxu0 0.0
        %494 = vmatpush1.xpose.msra.mxu0 0.0
        %495 = vmatprep.subr.mxu0 0.0
        %496 = vmatpush1.xpose.msra.mxu0 0.0
        %497 = vmatprep.subr.mxu0 0.0
        %498 = vmatpush1.xpose.msra.mxu0 0.0
        %499 = vmatprep.subr.mxu0 0.0
        %500 = vmatpush1.xpose.msra.mxu0 0.0
        %501 = vmatprep.subr.mxu0 0.0
        %502 = vmatpush1.xpose.msra.mxu0 0.0
        %503 = vmatprep.subr.mxu0 0.0
        %504 = vmatpush1.xpose.msra.mxu0 0.0
        %505 = vmatprep.subr.mxu0 0.0
        %506 = vmatpush1.xpose.msra.mxu0 0.0
        %507 = vmatprep.subr.mxu0 0.0
        %508 = vmatpush1.xpose.msra.mxu0 0.0
        %509 = vmatprep.subr.mxu0 0.0
        %510 = vmatpush1.xpose.msra.mxu0 0.0
        %511 = vmatprep.subr.mxu0 0.0
        %512 = vmatpush1.xpose.msra.mxu0 0.0
        %513 = vmatprep.subr.mxu0 0.0
        %514 = vmatpush1.xpose.msra.mxu0 0.0
        %515 = vmatprep.subr.mxu0 0.0
        %516 = vmatpush1.xpose.msra.mxu0 0.0
        %517 = vmatprep.subr.mxu0 0.0
        %518 = vmatpush1.xpose.msra.mxu0 0.0
        %519 = vmatprep.subr.mxu0 0.0
        %520 = vmatpush1.xpose.msra.mxu0 0.0
        %521 = vmatprep.subr.mxu0 0.0
        %522 = vmatpush1.xpose.msra.mxu0 %v489
        %523 = vmatprep.subr.mxu0 0.0
        %524 = vmatpush2.xpose.msra.mxu0 0.0
        %525 = vmatprep.subr.mxu0 0.0
        %526 = vmatpush2.xpose.msra.mxu0 0.0
        %527 = vmatprep.subr.mxu0 0.0
        %528 = vmatpush2.xpose.msra.mxu0 0.0
        %529 = vmatprep.subr.mxu0 0.0
        %530 = vmatpush2.xpose.msra.mxu0 0.0
        %531 = vmatprep.subr.mxu0 0.0
        %532 = vmatpush2.xpose.msra.mxu0 0.0
        %533 = vmatprep.subr.mxu0 0.0
        %534 = vmatpush2.xpose.msra.mxu0 0.0
        %535 = vmatprep.subr.mxu0 0.0
        %536 = vmatpush2.xpose.msra.mxu0 0.0
        %537 = vmatprep.subr.mxu0 0.0
        %538 = vmatpush2.xpose.msra.mxu0 0.0
        %539 = vmatprep.subr.mxu0 0.0
        %540 = vmatpush2.xpose.msra.mxu0 0.0
        %541 = vmatprep.subr.mxu0 0.0
        %542 = vmatpush2.xpose.msra.mxu0 0.0
        %543 = vmatprep.subr.mxu0 0.0
        %544 = vmatpush2.xpose.msra.mxu0 0.0
        %545 = vmatprep.subr.mxu0 0.0
        %546 = vmatpush2.xpose.msra.mxu0 0.0
        %547 = vmatprep.subr.mxu0 0.0
        %548 = vmatpush2.xpose.msra.mxu0 0.0
        %549 = vmatprep.subr.mxu0 0.0
        %550 = vmatpush2.xpose.msra.mxu0 0.0
        %551 = vmatprep.subr.mxu0 0.0
        %552 = vmatpush2.xpose.msra.mxu0 0.0
        %553 = vmatprep.subr.mxu0 0.0
        %554 = vmatpush2.xpose.msra.mxu0 0.0
        %555 = vmatprep.mubr.f32.mxu0 0.0
        %556 = vmatmul.mubr.f32.gmra.mxu0 %v486
        %v557 = vpop.f32.mrf.mxu0
        %v558 = vadd.f32 0.0, %v557
        %v559 = vpop.f32.mrf.mxu0
        %560 = vdwg.mxu0
        %v561 = vld [vmem:[%s329] sm:$0x1]
        %v563 = vlaneseq
        %v564 = vshrl.u32 %v563, 7
        %v565 = vsub.s32 0, %v564
        %v566 = vrot.slane %v561, %v565
        %v568 = vmul.f32 %v558, %v566
        %v569 = vsub.f32 %v561, 1.0
        %v570 = vmul.f32 %v569, 3.5355338e+11
        %v572 = vlaneseq
        %v573 = vshrl.u32 %v572, 7
        %v574 = vsub.s32 0, %v573
        %v575 = vrot.slane %v570, %v574
        %v577 = vadd.f32 %v568, %v575
        %v578 = vlaneseq
        %v579 = vshrl.u32 %v578, 7
        %v580 = vstv %s478
        %v581 = vadd.s32 %v580, %v579
        %v582 = vlaneseq
        %v583 = vand.u32 %v582, 127
        %v584 = vstv %s479
        %v585 = vadd.s32 %v584, %v583
        %vm586 = vcmp.gt.s32.totalorder %v581, %v585
        %v587 = vsub.f32 %v577, 3.5355338e+11
        %v588 = vsel %vm586, %v587, %v577
        %589 = vst.msk [vmem:[%s319] sm:$0xff] %vm484, %v588
        %s590 = sand.u32 %s208, 1
        %s591 = scalar_lea.sflag [#allocation5], %s590
        %s592 = sand.u32 %s208, 1
        %s593 = smul.addr %s592, 8
        %s594 = scalar_lea.vmem [#allocation4], %s593
        // Predicated region
        $region49: #{tpu_custom_call.1} parent=43 // pred_check
          %p595 = pneg %p218
        $region50: #{tpu_custom_call.1} parent=43 // pred_check_branch
          %597 = sbr.rel (%p595) target = $region52
        $region51: #{tpu_custom_call.1} parent=43 // pred_region
          %s599 = ssub.s32 128, 128
          %600 = vsyncadd %s591, %s599
          %s601 = sadd.s32 %s29, %s28
          %s602 = sadd.s32 %s601, %s27
          %s603 = smul.addr %s26, 4
          %s604 = sadd.s32 %s602, %s603
          %s605 = smul.addr %s604, 128
          %s606 = scalar_lea.hbm %s6, %s605
          %s608 = sshll.u32 %s594, 4
          %s609 = int_to_ptr.vmem [resolvable:$true] %s608
          %611 = dma.vmem_to_hbm [thread:$0]  %s609, 128, %s606, %s591
        $region52: #{tpu_custom_call.1} parent=43 // pred_fallthru
          _
      $region44: #{tpu_custom_call.1} parent=5 // pred_fallthru
        _
      %p612 = scmp.le.s32.totalorder 2, %s15
      // Predicated region
      $region53: #{tpu_custom_call.1} parent=5 // pred_check
        %p613 = pneg %p612
      $region54: #{tpu_custom_call.1} parent=5 // pred_check_branch
        %615 = sbr.rel (%p613) target = $region56
      $region55: #{tpu_custom_call.1} parent=5 // pred_region
        %s616 = ssub.s32 %s15, 2
        // Predicated region
        $region57: #{tpu_custom_call.1} parent=55 // pred_check
          %p617 = pneg %p224
        $region58: #{tpu_custom_call.1} parent=55 // pred_check_branch
          %619 = sbr.rel (%p617) target = $region60
        $region59: #{tpu_custom_call.1} parent=55 // pred_region
          %s620 = sand.u32 %s209, 1
          %s621 = scalar_lea.sflag [#allocation5], %s620
          %s622 = sand.u32 %s209, 1
          %s623 = smul.addr %s622, 8
          %s624 = scalar_lea.vmem [#allocation4], %s623
          %625 = dma.done %s621, 128
        $region60: #{tpu_custom_call.1} parent=55 // pred_fallthru
          _
      $region56: #{tpu_custom_call.1} parent=5 // pred_fallthru
        _
    $region6: #{tpu_custom_call.1} parent=1 // loop_footer
      %s19 = sadd.s32 1, %s15
    $region7: #{tpu_custom_call.1} parent=1 // loop_footer_branch
      %14 = sbr.rel target = $region3
    $region8: #{tpu_custom_call.1} parent=1 // loop_exit
      _
    %626 = vsyncpa [#allocation5], 1
    %s627 = scalar_lea.sflag [#allocation5], 1
    %628 = vsyncpa %s627, 1

</llo_original>
